<compile_context>
chip_gen: v6e
topology: v6e:2x2x1
jax: 0.10.0
libtpu: 0.0.40
codegen_flags: <defaults>
</compile_context>

<pallas_src>
import math
import functools

import numpy as np
import jax
import jax.numpy as jnp
from jax import lax
from jax.experimental import pallas as pl
from jax.experimental.pallas import tpu as pltpu


def _gaussian_1d(kernel_size: int, sigma: float) -> np.ndarray:
    """1D factor of the module's (quirky) Gaussian: exp(-((x-mean)/(2*sigma))^2)."""
    x = np.arange(kernel_size, dtype=np.float64)
    mean = (kernel_size - 1) / 2.0
    g = (1.0 / (sigma * math.sqrt(2.0 * math.pi))
         * np.exp(-(((x - mean) / (2.0 * sigma)) ** 2)))
    return (g / g.sum()).astype(np.float32)


def make_gaussian_weight(channels: int = 1, kernel_size: int = 3,
                         sigma: float = 0.5) -> jnp.ndarray:
    """Reproduces GaussianSmoothing.__init__ weight buffer, shape (C, K, K)."""
    g = _gaussian_1d(kernel_size, sigma).astype(np.float64)
    k2 = np.outer(g, g)
    k2 = (k2 / k2.sum()).astype(np.float32)
    w = np.broadcast_to(k2, (channels, kernel_size, kernel_size)).copy()
    return jnp.asarray(w, dtype=jnp.float32)


def _smooth_kernel(x_ref, o_ref, tmp_ref, *, wx, wy, Ho, Wo):
    # x_ref:   VMEM (H, W, BL)   -- BL planes packed on the lane axis
    # tmp_ref: VMEM (H, Wo, BL)  -- horizontal-pass scratch (f32)
    # o_ref:   VMEM (Ho, Wo, BL)
    K = len(wx)
    x = x_ref[...].astype(jnp.float32)

    # Horizontal (W / sublane axis) pass with compile-time constant taps.
    acc = x[:, 0:Wo, :] * wx[0]
    for kw in range(1, K):
        acc = acc + x[:, kw:kw + Wo, :] * wx[kw]
    tmp_ref[...] = acc

    # Vertical (H / outer axis) pass.
    t = tmp_ref[...]
    out = t[0:Ho] * wy[0]
    for kh in range(1, K):
        out = out + t[kh:kh + Ho] * wy[kh]
    o_ref[...] = out.astype(o_ref.dtype)


def gaussian_smoothing(x: jnp.ndarray, kernel_size: int = 3,
                       sigma: float = 0.5) -> jnp.ndarray:
    """x: (N, C, H, W). Returns (N, C, H-K+1, W-K+1), matching the module's forward."""
    N, C, H, W = x.shape
    K = kernel_size
    Ho, Wo = H - K + 1, W - K + 1
    NC = N * C

    taps = tuple(float(v) for v in _gaussian_1d(K, sigma))

    # Lane-dense layout: planes (N*C) on the last (lane) axis.
    x_t = jnp.transpose(x, (2, 3, 0, 1)).reshape(H, W, NC)

    # Choose the lane-block size against a ~16 MiB VMEM budget
    # (double-buffered in/out + f32 scratch), leaving headroom on every gen.
    itemsize = max(int(x.dtype.itemsize), 4)
    per_lane_bytes = (2 * H * W + 2 * Ho * Wo) * itemsize + H * Wo * 4
    budget = 16 * 1024 * 1024
    bl = max(budget // per_lane_bytes, 1)
    if NC <= bl or NC <= 128:
        BL = NC                                  # full extent -> always legal
    else:
        BL = min(max((bl // 128) * 128, 128), NC)  # lane-aligned block
    grid = (pl.cdiv(NC, BL),)

    kernel_fn = functools.partial(_smooth_kernel, wx=taps, wy=taps, Ho=Ho, Wo=Wo)

    out_t = pl.pallas_call(
        kernel_fn,
        out_shape=jax.ShapeDtypeStruct((Ho, Wo, NC), x.dtype),
        grid=grid,
        in_specs=[pl.BlockSpec((H, W, BL), lambda i: (0, 0, i))],
        out_specs=pl.BlockSpec((Ho, Wo, BL), lambda i: (0, 0, i)),
        scratch_shapes=[pltpu.VMEM((H, Wo, BL), jnp.float32)],
        compiler_params=pltpu.CompilerParams(
            dimension_semantics=("parallel",),
            vmem_limit_bytes=48 * 1024 * 1024),
    )(x_t)

    out = out_t.reshape(Ho, Wo, N, C)
    return jnp.transpose(out, (2, 3, 0, 1))


def _reference(x, weight):
    C, K, _ = weight.shape
    w = weight.reshape(C, 1, K, K)
    return lax.conv_general_dilated(
        x, w, window_strides=(1, 1), padding="VALID",
        dimension_numbers=("NCHW", "OIHW", "NCHW"),
        feature_group_count=C)


if __name__ == "__main__":
    N, C, H, W = 2, 4, 16, 16
    key = jax.random.PRNGKey(0)
    x = jax.random.normal(key, (N, C, H, W), dtype=jnp.float32)

    out = gaussian_smoothing(x, kernel_size=3, sigma=0.5)
    out = jax.block_until_ready(out)

    weight = make_gaussian_weight(channels=C, kernel_size=3, sigma=0.5)
    ref = jax.block_until_ready(_reference(x, weight))

    assert out.shape == (N, C, H - 2, W - 2), out.shape
    assert np.allclose(np.asarray(out), np.asarray(ref), atol=1e-5, rtol=1e-5)

    print("KERNEL_OK")
</pallas_src>

<mosaic_0001>
module attributes {stable_mosaic.version = 11 : i64} {
  func.func @_smooth_kernel(%arg0: i32, %arg1: memref<16x16x8xf32, #tpu.memory_space<vmem>>, %arg2: memref<14x14x8xf32, #tpu.memory_space<vmem>>, %arg3: memref<16x14x8xf32, #tpu.memory_space<vmem>>) attributes {dimension_semantics = [#tpu.dimension_semantics<parallel>], iteration_bounds = array<i64: 1>, scalar_prefetch = 0 : i64, scratch_operands = 1 : i64, tpu.core_type = #tpu.core_type<tc>, window_params = [{transform_indices = @transform_0, window_bounds = array<i64: 16, 16, 8>}, {transform_indices = @transform_1, window_bounds = array<i64: 14, 14, 8>}]} {
    %c0 = arith.constant 0 : index
    %c0_0 = arith.constant 0 : index
    %c0_1 = arith.constant 0 : index
    %0 = vector.load %arg1[%c0, %c0_0, %c0_1] : memref<16x16x8xf32, #tpu.memory_space<vmem>>, vector<16x16x8xf32>
    %1 = vector.extract_strided_slice %0 {offsets = [0, 0, 0], sizes = [16, 14, 8], strides = [1, 1, 1]} : vector<16x16x8xf32> to vector<16x14x8xf32>
    %cst = arith.constant 0.211941555 : f32
    %2 = vector.broadcast %cst : f32 to vector<16x14x8xf32>
    %3 = arith.mulf %1, %2 : vector<16x14x8xf32>
    %4 = vector.extract_strided_slice %0 {offsets = [0, 1, 0], sizes = [16, 14, 8], strides = [1, 1, 1]} : vector<16x16x8xf32> to vector<16x14x8xf32>
    %cst_2 = arith.constant 0.57611686 : f32
    %5 = vector.broadcast %cst_2 : f32 to vector<16x14x8xf32>
    %6 = arith.mulf %4, %5 : vector<16x14x8xf32>
    %7 = arith.addf %3, %6 : vector<16x14x8xf32>
    %8 = vector.extract_strided_slice %0 {offsets = [0, 2, 0], sizes = [16, 14, 8], strides = [1, 1, 1]} : vector<16x16x8xf32> to vector<16x14x8xf32>
    %cst_3 = arith.constant 0.211941555 : f32
    %9 = vector.broadcast %cst_3 : f32 to vector<16x14x8xf32>
    %10 = arith.mulf %8, %9 : vector<16x14x8xf32>
    %11 = arith.addf %7, %10 : vector<16x14x8xf32>
    %c0_4 = arith.constant 0 : index
    %c0_5 = arith.constant 0 : index
    %c0_6 = arith.constant 0 : index
    %12 = vector.load %arg3[%c0_4, %c0_5, %c0_6] : memref<16x14x8xf32, #tpu.memory_space<vmem>>, vector<16x14x8xf32>
    tpu.vector_store %arg3[%c0_4, %c0_5, %c0_6], %11 {strides = array<i32>} : memref<16x14x8xf32, #tpu.memory_space<vmem>>, vector<16x14x8xf32>,
    %c0_7 = arith.constant 0 : index
    %c0_8 = arith.constant 0 : index
    %c0_9 = arith.constant 0 : index
    %13 = vector.load %arg3[%c0_7, %c0_8, %c0_9] : memref<16x14x8xf32, #tpu.memory_space<vmem>>, vector<16x14x8xf32>
    %14 = vector.extract_strided_slice %13 {offsets = [0, 0, 0], sizes = [14, 14, 8], strides = [1, 1, 1]} : vector<16x14x8xf32> to vector<14x14x8xf32>
    %cst_10 = arith.constant 0.211941555 : f32
    %15 = vector.broadcast %cst_10 : f32 to vector<14x14x8xf32>
    %16 = arith.mulf %14, %15 : vector<14x14x8xf32>
    %17 = vector.extract_strided_slice %13 {offsets = [1, 0, 0], sizes = [14, 14, 8], strides = [1, 1, 1]} : vector<16x14x8xf32> to vector<14x14x8xf32>
    %cst_11 = arith.constant 0.57611686 : f32
    %18 = vector.broadcast %cst_11 : f32 to vector<14x14x8xf32>
    %19 = arith.mulf %17, %18 : vector<14x14x8xf32>
    %20 = arith.addf %16, %19 : vector<14x14x8xf32>
    %21 = vector.extract_strided_slice %13 {offsets = [2, 0, 0], sizes = [14, 14, 8], strides = [1, 1, 1]} : vector<16x14x8xf32> to vector<14x14x8xf32>
    %cst_12 = arith.constant 0.211941555 : f32
    %22 = vector.broadcast %cst_12 : f32 to vector<14x14x8xf32>
    %23 = arith.mulf %21, %22 : vector<14x14x8xf32>
    %24 = arith.addf %20, %23 : vector<14x14x8xf32>
    %c0_13 = arith.constant 0 : index
    %c0_14 = arith.constant 0 : index
    %c0_15 = arith.constant 0 : index
    %25 = vector.load %arg2[%c0_13, %c0_14, %c0_15] : memref<14x14x8xf32, #tpu.memory_space<vmem>>, vector<14x14x8xf32>
    tpu.vector_store %arg2[%c0_13, %c0_14, %c0_15], %24 {strides = array<i32>} : memref<14x14x8xf32, #tpu.memory_space<vmem>>, vector<14x14x8xf32>,
    return
  }
  func.func @transform_0(%arg0: i32) -> (i32, i32, i32) {
    %c0_i32 = arith.constant 0 : i32
    %c0_i32_0 = arith.constant 0 : i32
    %c0_i32_1 = arith.constant 0 : i32
    return %c0_i32, %c0_i32_0, %arg0 : i32, i32, i32
  }
  func.func @transform_1(%arg0: i32) -> (i32, i32, i32) {
    %c0_i32 = arith.constant 0 : i32
    %c0_i32_0 = arith.constant 0 : i32
    %c0_i32_1 = arith.constant 0 : i32
    return %c0_i32, %c0_i32_0, %arg0 : i32, i32, i32
  }
}

</mosaic_0001>

<llo_original>
// kernel: tpu_custom_call.1
$region0: #{tpu_custom_call.1}
  #allocation0 [shape = 'u32[]', space=smem, size = 0x4, offset = 0x4, fixed_abs, tag = 'smem constant byte address 0x4 - core index']
  #allocation1 [shape = 'u32[144,128]{1,0:T(1,128)}', space=vmem, size = 0x12000, scoped, tag = 'internal scratch']
  #allocation2 [shape = 'f32[16,14,8]{2,1,0:T(8,128)}', space=vmem, size = 0x20000, scoped, tag = 'scratch operand']
  %s0 = inlined_call_operand.vmem [shape: f32[16,16,8], index: 0, kind: input, shape index: {}]
  %s1 = inlined_call_operand.vmem [shape: f32[14,14,8], index: 1, kind: output, shape index: {}]
  %s2 = sld [smem:[#allocation0]]
  $region14: #{tpu_custom_call.1} parent=0
    _
  %s4 = ssub.s32 1, %s2
  %s5 = scalar_select 0, %s4, %s2
  // Predicated region
  $region2: #{tpu_custom_call.1} parent=0 // pred_check
    _
  $region3: #{tpu_custom_call.1} parent=0 // pred_check_branch
    %7 = sbr.rel (0) target = $region5
  $region4: #{tpu_custom_call.1} parent=0 // pred_region
    _
  $region5: #{tpu_custom_call.1} parent=0 // pred_fallthru
    _
  %v8 = vld [vmem:[%s0] sm:$0xff]
  %v9 = vld [vmem:[%s0 + $0x8] sm:$0xff]
  %v10 = vld [vmem:[%s0 + $0x10] sm:$0xff]
  %v11 = vld [vmem:[%s0 + $0x18] sm:$0xff]
  %v12 = vld [vmem:[%s0 + $0x20] sm:$0xff]
  %v13 = vld [vmem:[%s0 + $0x28] sm:$0xff]
  %v14 = vld [vmem:[%s0 + $0x30] sm:$0xff]
  %v15 = vld [vmem:[%s0 + $0x38] sm:$0xff]
  %v16 = vld [vmem:[%s0 + $0x40] sm:$0xff]
  %v17 = vld [vmem:[%s0 + $0x48] sm:$0xff]
  %v18 = vld [vmem:[%s0 + $0x50] sm:$0xff]
  %v19 = vld [vmem:[%s0 + $0x58] sm:$0xff]
  %v20 = vld [vmem:[%s0 + $0x60] sm:$0xff]
  %v21 = vld [vmem:[%s0 + $0x68] sm:$0xff]
  %v22 = vld [vmem:[%s0 + $0x70] sm:$0xff]
  %v23 = vld [vmem:[%s0 + $0x78] sm:$0xff]
  %v24 = vld [vmem:[%s0 + $0x80] sm:$0xff]
  %v25 = vld [vmem:[%s0 + $0x88] sm:$0xff]
  %v26 = vld [vmem:[%s0 + $0x90] sm:$0xff]
  %v27 = vld [vmem:[%s0 + $0x98] sm:$0xff]
  %v28 = vld [vmem:[%s0 + $0xa0] sm:$0xff]
  %v29 = vld [vmem:[%s0 + $0xa8] sm:$0xff]
  %v30 = vld [vmem:[%s0 + $0xb0] sm:$0xff]
  %v31 = vld [vmem:[%s0 + $0xb8] sm:$0xff]
  %v32 = vld [vmem:[%s0 + $0xc0] sm:$0xff]
  %v33 = vld [vmem:[%s0 + $0xc8] sm:$0xff]
  %v34 = vld [vmem:[%s0 + $0xd0] sm:$0xff]
  %v35 = vld [vmem:[%s0 + $0xd8] sm:$0xff]
  %v36 = vld [vmem:[%s0 + $0xe0] sm:$0xff]
  %v37 = vld [vmem:[%s0 + $0xe8] sm:$0xff]
  %v38 = vld [vmem:[%s0 + $0xf0] sm:$0xff]
  %v39 = vld [vmem:[%s0 + $0xf8] sm:$0xff]
  %v40 = vmul.f32 %v8, 0.21194156
  %v41 = vmul.f32 %v9, 0.21194156
  %v42 = vmul.f32 %v10, 0.21194156
  %v43 = vmul.f32 %v11, 0.21194156
  %v44 = vmul.f32 %v12, 0.21194156
  %v45 = vmul.f32 %v13, 0.21194156
  %v46 = vmul.f32 %v14, 0.21194156
  %v47 = vmul.f32 %v15, 0.21194156
  %v48 = vmul.f32 %v16, 0.21194156
  %v49 = vmul.f32 %v17, 0.21194156
  %v50 = vmul.f32 %v18, 0.21194156
  %v51 = vmul.f32 %v19, 0.21194156
  %v52 = vmul.f32 %v20, 0.21194156
  %v53 = vmul.f32 %v21, 0.21194156
  %v54 = vmul.f32 %v22, 0.21194156
  %v55 = vmul.f32 %v23, 0.21194156
  %v56 = vmul.f32 %v24, 0.21194156
  %v57 = vmul.f32 %v25, 0.21194156
  %v58 = vmul.f32 %v26, 0.21194156
  %v59 = vmul.f32 %v27, 0.21194156
  %v60 = vmul.f32 %v28, 0.21194156
  %v61 = vmul.f32 %v29, 0.21194156
  %v62 = vmul.f32 %v30, 0.21194156
  %v63 = vmul.f32 %v31, 0.21194156
  %v64 = vmul.f32 %v32, 0.21194156
  %v65 = vmul.f32 %v33, 0.21194156
  %v66 = vmul.f32 %v34, 0.21194156
  %v67 = vmul.f32 %v35, 0.21194156
  %v68 = vmul.f32 %v36, 0.21194156
  %v69 = vmul.f32 %v37, 0.21194156
  %v70 = vmul.f32 %v38, 0.21194156
  %v71 = vmul.f32 %v39, 0.21194156
  %v72 = vmul.f32 %v8, 0.57611686
  %v73 = vmul.f32 %v9, 0.57611686
  %v74 = vmul.f32 %v10, 0.57611686
  %v75 = vmul.f32 %v11, 0.57611686
  %v76 = vmul.f32 %v12, 0.57611686
  %v77 = vmul.f32 %v13, 0.57611686
  %v78 = vmul.f32 %v14, 0.57611686
  %v79 = vmul.f32 %v15, 0.57611686
  %v80 = vmul.f32 %v16, 0.57611686
  %v81 = vmul.f32 %v17, 0.57611686
  %v82 = vmul.f32 %v18, 0.57611686
  %v83 = vmul.f32 %v19, 0.57611686
  %v84 = vmul.f32 %v20, 0.57611686
  %v85 = vmul.f32 %v21, 0.57611686
  %v86 = vmul.f32 %v22, 0.57611686
  %v87 = vmul.f32 %v23, 0.57611686
  %v88 = vmul.f32 %v24, 0.57611686
  %v89 = vmul.f32 %v25, 0.57611686
  %v90 = vmul.f32 %v26, 0.57611686
  %v91 = vmul.f32 %v27, 0.57611686
  %v92 = vmul.f32 %v28, 0.57611686
  %v93 = vmul.f32 %v29, 0.57611686
  %v94 = vmul.f32 %v30, 0.57611686
  %v95 = vmul.f32 %v31, 0.57611686
  %v96 = vmul.f32 %v32, 0.57611686
  %v97 = vmul.f32 %v33, 0.57611686
  %v98 = vmul.f32 %v34, 0.57611686
  %v99 = vmul.f32 %v35, 0.57611686
  %v100 = vmul.f32 %v36, 0.57611686
  %v101 = vmul.f32 %v37, 0.57611686
  %v102 = vmul.f32 %v38, 0.57611686
  %v103 = vmul.f32 %v39, 0.57611686
  %vm136 = vcmask 1046528
  %v137 = vrot.slane %v72, 1
  %v138 = vrot.slane %v73, 1
  %v139 = vsel %vm136, %v137, %v138
  %v140 = vrot.slane %v74, 1
  %v141 = vrot.slane %v75, 1
  %v142 = vsel %vm136, %v140, %v141
  %v143 = vrot.slane %v76, 1
  %v144 = vrot.slane %v77, 1
  %v145 = vsel %vm136, %v143, %v144
  %v146 = vrot.slane %v78, 1
  %v147 = vrot.slane %v79, 1
  %v148 = vsel %vm136, %v146, %v147
  %v149 = vrot.slane %v80, 1
  %v150 = vrot.slane %v81, 1
  %v151 = vsel %vm136, %v149, %v150
  %v152 = vrot.slane %v82, 1
  %v153 = vrot.slane %v83, 1
  %v154 = vsel %vm136, %v152, %v153
  %v155 = vrot.slane %v84, 1
  %v156 = vrot.slane %v85, 1
  %v157 = vsel %vm136, %v155, %v156
  %v158 = vrot.slane %v86, 1
  %v159 = vrot.slane %v87, 1
  %v160 = vsel %vm136, %v158, %v159
  %v161 = vrot.slane %v88, 1
  %v162 = vrot.slane %v89, 1
  %v163 = vsel %vm136, %v161, %v162
  %v164 = vrot.slane %v90, 1
  %v165 = vrot.slane %v91, 1
  %v166 = vsel %vm136, %v164, %v165
  %v167 = vrot.slane %v92, 1
  %v168 = vrot.slane %v93, 1
  %v169 = vsel %vm136, %v167, %v168
  %v170 = vrot.slane %v94, 1
  %v171 = vrot.slane %v95, 1
  %v172 = vsel %vm136, %v170, %v171
  %v173 = vrot.slane %v96, 1
  %v174 = vrot.slane %v97, 1
  %v175 = vsel %vm136, %v173, %v174
  %v176 = vrot.slane %v98, 1
  %v177 = vrot.slane %v99, 1
  %v178 = vsel %vm136, %v176, %v177
  %v179 = vrot.slane %v100, 1
  %v180 = vrot.slane %v101, 1
  %v181 = vsel %vm136, %v179, %v180
  %v182 = vrot.slane %v102, 1
  %v183 = vrot.slane %v103, 1
  %v184 = vsel %vm136, %v182, %v183
  %v217 = vadd.f32 %v40, %v139
  %v218 = vadd.f32 %v41, %v138
  %v219 = vadd.f32 %v42, %v142
  %v220 = vadd.f32 %v43, %v141
  %v221 = vadd.f32 %v44, %v145
  %v222 = vadd.f32 %v45, %v144
  %v223 = vadd.f32 %v46, %v148
  %v224 = vadd.f32 %v47, %v147
  %v225 = vadd.f32 %v48, %v151
  %v226 = vadd.f32 %v49, %v150
  %v227 = vadd.f32 %v50, %v154
  %v228 = vadd.f32 %v51, %v153
  %v229 = vadd.f32 %v52, %v157
  %v230 = vadd.f32 %v53, %v156
  %v231 = vadd.f32 %v54, %v160
  %v232 = vadd.f32 %v55, %v159
  %v233 = vadd.f32 %v56, %v163
  %v234 = vadd.f32 %v57, %v162
  %v235 = vadd.f32 %v58, %v166
  %v236 = vadd.f32 %v59, %v165
  %v237 = vadd.f32 %v60, %v169
  %v238 = vadd.f32 %v61, %v168
  %v239 = vadd.f32 %v62, %v172
  %v240 = vadd.f32 %v63, %v171
  %v241 = vadd.f32 %v64, %v175
  %v242 = vadd.f32 %v65, %v174
  %v243 = vadd.f32 %v66, %v178
  %v244 = vadd.f32 %v67, %v177
  %v245 = vadd.f32 %v68, %v181
  %v246 = vadd.f32 %v69, %v180
  %v247 = vadd.f32 %v70, %v184
  %v248 = vadd.f32 %v71, %v183
  %vm281 = vcmask 1045504
  %v282 = vrot.slane %v40, 2
  %v283 = vrot.slane %v41, 2
  %v284 = vsel %vm281, %v282, %v283
  %v285 = vrot.slane %v42, 2
  %v286 = vrot.slane %v43, 2
  %v287 = vsel %vm281, %v285, %v286
  %v288 = vrot.slane %v44, 2
  %v289 = vrot.slane %v45, 2
  %v290 = vsel %vm281, %v288, %v289
  %v291 = vrot.slane %v46, 2
  %v292 = vrot.slane %v47, 2
  %v293 = vsel %vm281, %v291, %v292
  %v294 = vrot.slane %v48, 2
  %v295 = vrot.slane %v49, 2
  %v296 = vsel %vm281, %v294, %v295
  %v297 = vrot.slane %v50, 2
  %v298 = vrot.slane %v51, 2
  %v299 = vsel %vm281, %v297, %v298
  %v300 = vrot.slane %v52, 2
  %v301 = vrot.slane %v53, 2
  %v302 = vsel %vm281, %v300, %v301
  %v303 = vrot.slane %v54, 2
  %v304 = vrot.slane %v55, 2
  %v305 = vsel %vm281, %v303, %v304
  %v306 = vrot.slane %v56, 2
  %v307 = vrot.slane %v57, 2
  %v308 = vsel %vm281, %v306, %v307
  %v309 = vrot.slane %v58, 2
  %v310 = vrot.slane %v59, 2
  %v311 = vsel %vm281, %v309, %v310
  %v312 = vrot.slane %v60, 2
  %v313 = vrot.slane %v61, 2
  %v314 = vsel %vm281, %v312, %v313
  %v315 = vrot.slane %v62, 2
  %v316 = vrot.slane %v63, 2
  %v317 = vsel %vm281, %v315, %v316
  %v318 = vrot.slane %v64, 2
  %v319 = vrot.slane %v65, 2
  %v320 = vsel %vm281, %v318, %v319
  %v321 = vrot.slane %v66, 2
  %v322 = vrot.slane %v67, 2
  %v323 = vsel %vm281, %v321, %v322
  %v324 = vrot.slane %v68, 2
  %v325 = vrot.slane %v69, 2
  %v326 = vsel %vm281, %v324, %v325
  %v327 = vrot.slane %v70, 2
  %v328 = vrot.slane %v71, 2
  %v329 = vsel %vm281, %v327, %v328
  %v362 = vadd.f32 %v217, %v284
  %v363 = vadd.f32 %v218, %v283
  %v364 = vadd.f32 %v219, %v287
  %v365 = vadd.f32 %v220, %v286
  %v366 = vadd.f32 %v221, %v290
  %v367 = vadd.f32 %v222, %v289
  %v368 = vadd.f32 %v223, %v293
  %v369 = vadd.f32 %v224, %v292
  %v370 = vadd.f32 %v225, %v296
  %v371 = vadd.f32 %v226, %v295
  %v372 = vadd.f32 %v227, %v299
  %v373 = vadd.f32 %v228, %v298
  %v374 = vadd.f32 %v229, %v302
  %v375 = vadd.f32 %v230, %v301
  %v376 = vadd.f32 %v231, %v305
  %v377 = vadd.f32 %v232, %v304
  %v378 = vadd.f32 %v233, %v308
  %v379 = vadd.f32 %v234, %v307
  %v380 = vadd.f32 %v235, %v311
  %v381 = vadd.f32 %v236, %v310
  %v382 = vadd.f32 %v237, %v314
  %v383 = vadd.f32 %v238, %v313
  %v384 = vadd.f32 %v239, %v317
  %v385 = vadd.f32 %v240, %v316
  %v386 = vadd.f32 %v241, %v320
  %v387 = vadd.f32 %v242, %v319
  %v388 = vadd.f32 %v243, %v323
  %v389 = vadd.f32 %v244, %v322
  %v390 = vadd.f32 %v245, %v326
  %v391 = vadd.f32 %v246, %v325
  %v392 = vadd.f32 %v247, %v329
  %v393 = vadd.f32 %v248, %v328
  %vm394 = vcmask 64512
  %395 = vst.msk [vmem:[#allocation2] sm:$0xff] %vm394, %v362
  %vm396 = vcmask 62464
  %397 = vst.msk [vmem:[#allocation2 + $0x8] sm:$0x3f] %vm396, %v363
  %398 = vst.msk [vmem:[#allocation2 + $0x10] sm:$0xff] %vm394, %v364
  %399 = vst.msk [vmem:[#allocation2 + $0x18] sm:$0x3f] %vm396, %v365
  %400 = vst.msk [vmem:[#allocation2 + $0x20] sm:$0xff] %vm394, %v366
  %401 = vst.msk [vmem:[#allocation2 + $0x28] sm:$0x3f] %vm396, %v367
  %402 = vst.msk [vmem:[#allocation2 + $0x30] sm:$0xff] %vm394, %v368
  %403 = vst.msk [vmem:[#allocation2 + $0x38] sm:$0x3f] %vm396, %v369
  %404 = vst.msk [vmem:[#allocation2 + $0x40] sm:$0xff] %vm394, %v370
  %405 = vst.msk [vmem:[#allocation2 + $0x48] sm:$0x3f] %vm396, %v371
  %406 = vst.msk [vmem:[#allocation2 + $0x50] sm:$0xff] %vm394, %v372
  %407 = vst.msk [vmem:[#allocation2 + $0x58] sm:$0x3f] %vm396, %v373
  %408 = vst.msk [vmem:[#allocation2 + $0x60] sm:$0xff] %vm394, %v374
  %409 = vst.msk [vmem:[#allocation2 + $0x68] sm:$0x3f] %vm396, %v375
  %410 = vst.msk [vmem:[#allocation2 + $0x70] sm:$0xff] %vm394, %v376
  %411 = vst.msk [vmem:[#allocation2 + $0x78] sm:$0x3f] %vm396, %v377
  %412 = vst.msk [vmem:[#allocation2 + $0x80] sm:$0xff] %vm394, %v378
  %413 = vst.msk [vmem:[#allocation2 + $0x88] sm:$0x3f] %vm396, %v379
  %414 = vst.msk [vmem:[#allocation2 + $0x90] sm:$0xff] %vm394, %v380
  %415 = vst.msk [vmem:[#allocation2 + $0x98] sm:$0x3f] %vm396, %v381
  %416 = vst.msk [vmem:[#allocation2 + $0xa0] sm:$0xff] %vm394, %v382
  %417 = vst.msk [vmem:[#allocation2 + $0xa8] sm:$0x3f] %vm396, %v383
  %418 = vst.msk [vmem:[#allocation2 + $0xb0] sm:$0xff] %vm394, %v384
  %419 = vst.msk [vmem:[#allocation2 + $0xb8] sm:$0x3f] %vm396, %v385
  %420 = vst.msk [vmem:[#allocation2 + $0xc0] sm:$0xff] %vm394, %v386
  %421 = vst.msk [vmem:[#allocation2 + $0xc8] sm:$0x3f] %vm396, %v387
  %422 = vst.msk [vmem:[#allocation2 + $0xd0] sm:$0xff] %vm394, %v388
  %423 = vst.msk [vmem:[#allocation2 + $0xd8] sm:$0x3f] %vm396, %v389
  %424 = vst.msk [vmem:[#allocation2 + $0xe0] sm:$0xff] %vm394, %v390
  %425 = vst.msk [vmem:[#allocation2 + $0xe8] sm:$0x3f] %vm396, %v391
  %426 = vst.msk [vmem:[#allocation2 + $0xf0] sm:$0xff] %vm394, %v392
  %427 = vst.msk [vmem:[#allocation2 + $0xf8] sm:$0x3f] %vm396, %v393
  %v428 = vld [vmem:[#allocation2] sm:$0xff]
  %v429 = vld [vmem:[#allocation2 + $0x8] sm:$0x3f]
  %v430 = vld [vmem:[#allocation2 + $0x10] sm:$0xff]
  %v431 = vld [vmem:[#allocation2 + $0x18] sm:$0x3f]
  %v432 = vld [vmem:[#allocation2 + $0x20] sm:$0xff]
  %v433 = vld [vmem:[#allocation2 + $0x28] sm:$0x3f]
  %v434 = vld [vmem:[#allocation2 + $0x30] sm:$0xff]
  %v435 = vld [vmem:[#allocation2 + $0x38] sm:$0x3f]
  %v436 = vld [vmem:[#allocation2 + $0x40] sm:$0xff]
  %v437 = vld [vmem:[#allocation2 + $0x48] sm:$0x3f]
  %v438 = vld [vmem:[#allocation2 + $0x50] sm:$0xff]
  %v439 = vld [vmem:[#allocation2 + $0x58] sm:$0x3f]
  %v440 = vld [vmem:[#allocation2 + $0x60] sm:$0xff]
  %v441 = vld [vmem:[#allocation2 + $0x68] sm:$0x3f]
  %v442 = vld [vmem:[#allocation2 + $0x70] sm:$0xff]
  %v443 = vld [vmem:[#allocation2 + $0x78] sm:$0x3f]
  %v444 = vld [vmem:[#allocation2 + $0x80] sm:$0xff]
  %v445 = vld [vmem:[#allocation2 + $0x88] sm:$0x3f]
  %v446 = vld [vmem:[#allocation2 + $0x90] sm:$0xff]
  %v447 = vld [vmem:[#allocation2 + $0x98] sm:$0x3f]
  %v448 = vld [vmem:[#allocation2 + $0xa0] sm:$0xff]
  %v449 = vld [vmem:[#allocation2 + $0xa8] sm:$0x3f]
  %v450 = vld [vmem:[#allocation2 + $0xb0] sm:$0xff]
  %v451 = vld [vmem:[#allocation2 + $0xb8] sm:$0x3f]
  %v452 = vld [vmem:[#allocation2 + $0xc0] sm:$0xff]
  %v453 = vld [vmem:[#allocation2 + $0xc8] sm:$0x3f]
  %v454 = vld [vmem:[#allocation2 + $0xd0] sm:$0xff]
  %v455 = vld [vmem:[#allocation2 + $0xd8] sm:$0x3f]
  %v456 = vld [vmem:[#allocation2 + $0xe0] sm:$0xff]
  %v457 = vld [vmem:[#allocation2 + $0xe8] sm:$0x3f]
  %v458 = vld [vmem:[#allocation2 + $0xf0] sm:$0xff]
  %v459 = vld [vmem:[#allocation2 + $0xf8] sm:$0x3f]
  %v460 = vmul.f32 %v428, 0.21194156
  %v461 = vmul.f32 %v429, 0.21194156
  %v462 = vmul.f32 %v430, 0.21194156
  %v463 = vmul.f32 %v431, 0.21194156
  %v464 = vmul.f32 %v432, 0.21194156
  %v465 = vmul.f32 %v433, 0.21194156
  %v466 = vmul.f32 %v434, 0.21194156
  %v467 = vmul.f32 %v435, 0.21194156
  %v468 = vmul.f32 %v436, 0.21194156
  %v469 = vmul.f32 %v437, 0.21194156
  %v470 = vmul.f32 %v438, 0.21194156
  %v471 = vmul.f32 %v439, 0.21194156
  %v472 = vmul.f32 %v440, 0.21194156
  %v473 = vmul.f32 %v441, 0.21194156
  %v474 = vmul.f32 %v442, 0.21194156
  %v475 = vmul.f32 %v443, 0.21194156
  %v476 = vmul.f32 %v444, 0.21194156
  %v477 = vmul.f32 %v445, 0.21194156
  %v478 = vmul.f32 %v446, 0.21194156
  %v479 = vmul.f32 %v447, 0.21194156
  %v480 = vmul.f32 %v448, 0.21194156
  %v481 = vmul.f32 %v449, 0.21194156
  %v482 = vmul.f32 %v450, 0.21194156
  %v483 = vmul.f32 %v451, 0.21194156
  %v484 = vmul.f32 %v452, 0.21194156
  %v485 = vmul.f32 %v453, 0.21194156
  %v486 = vmul.f32 %v454, 0.21194156
  %v487 = vmul.f32 %v455, 0.21194156
  %v488 = vmul.f32 %v430, 0.57611686
  %v489 = vmul.f32 %v431, 0.57611686
  %v490 = vmul.f32 %v432, 0.57611686
  %v491 = vmul.f32 %v433, 0.57611686
  %v492 = vmul.f32 %v434, 0.57611686
  %v493 = vmul.f32 %v435, 0.57611686
  %v494 = vmul.f32 %v436, 0.57611686
  %v495 = vmul.f32 %v437, 0.57611686
  %v496 = vmul.f32 %v438, 0.57611686
  %v497 = vmul.f32 %v439, 0.57611686
  %v498 = vmul.f32 %v440, 0.57611686
  %v499 = vmul.f32 %v441, 0.57611686
  %v500 = vmul.f32 %v442, 0.57611686
  %v501 = vmul.f32 %v443, 0.57611686
  %v502 = vmul.f32 %v444, 0.57611686
  %v503 = vmul.f32 %v445, 0.57611686
  %v504 = vmul.f32 %v446, 0.57611686
  %v505 = vmul.f32 %v447, 0.57611686
  %v506 = vmul.f32 %v448, 0.57611686
  %v507 = vmul.f32 %v449, 0.57611686
  %v508 = vmul.f32 %v450, 0.57611686
  %v509 = vmul.f32 %v451, 0.57611686
  %v510 = vmul.f32 %v452, 0.57611686
  %v511 = vmul.f32 %v453, 0.57611686
  %v512 = vmul.f32 %v454, 0.57611686
  %v513 = vmul.f32 %v455, 0.57611686
  %v514 = vmul.f32 %v456, 0.57611686
  %v515 = vmul.f32 %v457, 0.57611686
  %v516 = vadd.f32 %v460, %v488
  %v517 = vadd.f32 %v461, %v489
  %v518 = vadd.f32 %v462, %v490
  %v519 = vadd.f32 %v463, %v491
  %v520 = vadd.f32 %v464, %v492
  %v521 = vadd.f32 %v465, %v493
  %v522 = vadd.f32 %v466, %v494
  %v523 = vadd.f32 %v467, %v495
  %v524 = vadd.f32 %v468, %v496
  %v525 = vadd.f32 %v469, %v497
  %v526 = vadd.f32 %v470, %v498
  %v527 = vadd.f32 %v471, %v499
  %v528 = vadd.f32 %v472, %v500
  %v529 = vadd.f32 %v473, %v501
  %v530 = vadd.f32 %v474, %v502
  %v531 = vadd.f32 %v475, %v503
  %v532 = vadd.f32 %v476, %v504
  %v533 = vadd.f32 %v477, %v505
  %v534 = vadd.f32 %v478, %v506
  %v535 = vadd.f32 %v479, %v507
  %v536 = vadd.f32 %v480, %v508
  %v537 = vadd.f32 %v481, %v509
  %v538 = vadd.f32 %v482, %v510
  %v539 = vadd.f32 %v483, %v511
  %v540 = vadd.f32 %v484, %v512
  %v541 = vadd.f32 %v485, %v513
  %v542 = vadd.f32 %v486, %v514
  %v543 = vadd.f32 %v487, %v515
  %v544 = vmul.f32 %v456, 0.21194156
  %v545 = vmul.f32 %v457, 0.21194156
  %v546 = vmul.f32 %v458, 0.21194156
  %v547 = vmul.f32 %v459, 0.21194156
  %v548 = vadd.f32 %v516, %v464
  %v549 = vadd.f32 %v517, %v465
  %v550 = vadd.f32 %v518, %v466
  %v551 = vadd.f32 %v519, %v467
  %v552 = vadd.f32 %v520, %v468
  %v553 = vadd.f32 %v521, %v469
  %v554 = vadd.f32 %v522, %v470
  %v555 = vadd.f32 %v523, %v471
  %v556 = vadd.f32 %v524, %v472
  %v557 = vadd.f32 %v525, %v473
  %v558 = vadd.f32 %v526, %v474
  %v559 = vadd.f32 %v527, %v475
  %v560 = vadd.f32 %v528, %v476
  %v561 = vadd.f32 %v529, %v477
  %v562 = vadd.f32 %v530, %v478
  %v563 = vadd.f32 %v531, %v479
  %v564 = vadd.f32 %v532, %v480
  %v565 = vadd.f32 %v533, %v481
  %v566 = vadd.f32 %v534, %v482
  %v567 = vadd.f32 %v535, %v483
  %v568 = vadd.f32 %v536, %v484
  %v569 = vadd.f32 %v537, %v485
  %v570 = vadd.f32 %v538, %v486
  %v571 = vadd.f32 %v539, %v487
  %v572 = vadd.f32 %v540, %v544
  %v573 = vadd.f32 %v541, %v545
  %v574 = vadd.f32 %v542, %v546
  %v575 = vadd.f32 %v543, %v547
  %576 = vst.msk [vmem:[%s1] sm:$0xff] %vm394, %v548
  %577 = vst.msk [vmem:[%s1 + $0x8] sm:$0x3f] %vm396, %v549
  %578 = vst.msk [vmem:[%s1 + $0x10] sm:$0xff] %vm394, %v550
  %579 = vst.msk [vmem:[%s1 + $0x18] sm:$0x3f] %vm396, %v551
  %580 = vst.msk [vmem:[%s1 + $0x20] sm:$0xff] %vm394, %v552
  %581 = vst.msk [vmem:[%s1 + $0x28] sm:$0x3f] %vm396, %v553
  %582 = vst.msk [vmem:[%s1 + $0x30] sm:$0xff] %vm394, %v554
  %583 = vst.msk [vmem:[%s1 + $0x38] sm:$0x3f] %vm396, %v555
  %584 = vst.msk [vmem:[%s1 + $0x40] sm:$0xff] %vm394, %v556
  %585 = vst.msk [vmem:[%s1 + $0x48] sm:$0x3f] %vm396, %v557
  %586 = vst.msk [vmem:[%s1 + $0x50] sm:$0xff] %vm394, %v558
  %587 = vst.msk [vmem:[%s1 + $0x58] sm:$0x3f] %vm396, %v559
  %588 = vst.msk [vmem:[%s1 + $0x60] sm:$0xff] %vm394, %v560
  %589 = vst.msk [vmem:[%s1 + $0x68] sm:$0x3f] %vm396, %v561
  %590 = vst.msk [vmem:[%s1 + $0x70] sm:$0xff] %vm394, %v562
  %591 = vst.msk [vmem:[%s1 + $0x78] sm:$0x3f] %vm396, %v563
  %592 = vst.msk [vmem:[%s1 + $0x80] sm:$0xff] %vm394, %v564
  %593 = vst.msk [vmem:[%s1 + $0x88] sm:$0x3f] %vm396, %v565
  %594 = vst.msk [vmem:[%s1 + $0x90] sm:$0xff] %vm394, %v566
  %595 = vst.msk [vmem:[%s1 + $0x98] sm:$0x3f] %vm396, %v567
  %596 = vst.msk [vmem:[%s1 + $0xa0] sm:$0xff] %vm394, %v568
  %597 = vst.msk [vmem:[%s1 + $0xa8] sm:$0x3f] %vm396, %v569
  %598 = vst.msk [vmem:[%s1 + $0xb0] sm:$0xff] %vm394, %v570
  %599 = vst.msk [vmem:[%s1 + $0xb8] sm:$0x3f] %vm396, %v571
  %600 = vst.msk [vmem:[%s1 + $0xc0] sm:$0xff] %vm394, %v572
  %601 = vst.msk [vmem:[%s1 + $0xc8] sm:$0x3f] %vm396, %v573
  %602 = vst.msk [vmem:[%s1 + $0xd0] sm:$0xff] %vm394, %v574
  %603 = vst.msk [vmem:[%s1 + $0xd8] sm:$0x3f] %vm396, %v575
  // Predicated region
  $region6: #{tpu_custom_call.1} parent=0 // pred_check
    _
  $region7: #{tpu_custom_call.1} parent=0 // pred_check_branch
    %605 = sbr.rel (0) target = $region9
  $region8: #{tpu_custom_call.1} parent=0 // pred_region
    _
  $region9: #{tpu_custom_call.1} parent=0 // pred_fallthru
    _
  // Predicated region
  $region10: #{tpu_custom_call.1} parent=0 // pred_check
    _
  $region11: #{tpu_custom_call.1} parent=0 // pred_check_branch
    %607 = sbr.rel (0) target = $region13
  $region12: #{tpu_custom_call.1} parent=0 // pred_region
    _
  $region13: #{tpu_custom_call.1} parent=0 // pred_fallthru
    _

</llo_original>
